<compile_context>
chip_gen: v5e
topology: v5e:2x2
jax: 0.10.0
libtpu: 0.0.40
codegen_flags: <defaults>
</compile_context>

<pallas_src>
import jax
import jax.numpy as jnp
from jax.experimental import pallas as pl
from jax.experimental.pallas import tpu as pltpu


def _lateral_inhibition_kernel(x_ref, w_ref, theta_ref, diag_ref, o_ref, acc_ref):
    """Grid axes: (i = batch tile, j = output-feature tile, kk = input-feature tile).

      x_ref    : (TB, TF)  x block indexed by (i, kk)
      w_ref    : (TF, TF)  w block indexed by (kk, j)   (matmul dtype, e.g. bf16)
      theta_ref: (1,  TF)  theta block indexed by kk    (f32)
      diag_ref : (1,  TF)  diag(w) block indexed by j   (f32)
      o_ref    : (TB, TF)  output block indexed by (i, j)
      acc_ref  : (TB, TF)  f32 VMEM accumulator scratch
    """
    j_idx = pl.program_id(1)
    k_idx = pl.program_id(2)

    @pl.when(k_idx == 0)
    def _():
        acc_ref[...] = jnp.zeros_like(acc_ref)

    # Apply theta in f32 on the VPU (v5e has no bf16 VPU path); cast only the
    # MXU operand to the matmul dtype.
    scaled_f32 = x_ref[...].astype(jnp.float32) * theta_ref[...]        # (TB, TF)
    scaled = scaled_f32.astype(w_ref.dtype)
    acc_ref[...] += jnp.dot(scaled, w_ref[...],
                            preferred_element_type=jnp.float32)

    # Only the kk == j block's w tile intersects the global diagonal (tk == tn
    # by construction); subtract its diagonal contribution: (x*theta)*diag(w).
    @pl.when(k_idx == j_idx)
    def _():
        acc_ref[...] -= scaled_f32 * diag_ref[...]

    @pl.when(k_idx == pl.num_programs(2) - 1)
    def _():
        o_ref[...] = acc_ref[...].astype(o_ref.dtype)


def _pad_to(n, m):
    return ((n + m - 1) // m) * m


# Double-buffered VMEM footprint budget, safe under every generation's scoped
# default / physical VMEM (v7x: 64 MiB physical) with headroom for Mosaic's
# internal scratch.
_VMEM_BUDGET = 22 * 1024 * 1024


def lateral_inhibition(x, w, b, k, *, matmul_dtype=jnp.bfloat16):
    """Lateral inhibition forward pass.

    Args:
      x: (B, F) input activations.
      w: (F, F) learnable inhibition weights.
      b: (F,)   learnable bias.
      k: python float, sigmoid scaling factor.
      matmul_dtype: dtype fed to the MXU (bf16 default; f32 for exactness).

    Returns:
      (B, F) inhibited features, same dtype as x.
    """
    bsz, feat = x.shape
    assert w.shape == (feat, feat)
    assert b.shape == (feat,)
    out_dtype = x.dtype

    # ---- feature tile (shared by the N and K grid axes so the diagonal
    # ---- correction's kk == j test is exact) and padding ------------------
    fp = _pad_to(feat, 128)
    tf = next(c for c in (1024, 512, 256, 128) if fp % c == 0)

    # ---- batch tile: as large as the VMEM budget allows (w is re-streamed
    # ---- B/tb times, so tb directly divides the dominant HBM term) --------
    w_bytes = jnp.dtype(matmul_dtype).itemsize
    x_bytes = jnp.dtype(x.dtype).itemsize
    o_bytes = jnp.dtype(out_dtype).itemsize
    fixed = 2 * tf * tf * w_bytes + 4 * 8 * tf * 4        # w dbl-buf + theta/diag slivers
    per_tb = tf * (2 * x_bytes + 2 * o_bytes + 4)         # x dbl-buf + out dbl-buf + acc
    tb = 8
    for cand in (1024, 512, 256, 128, 64, 32, 16, 8):
        if fixed + cand * per_tb <= _VMEM_BUDGET:
            tb = cand
            break
    bp_min = _pad_to(bsz, 8)
    if bp_min <= tb:
        tb = bp_min            # whole (padded) batch in one tile
        bp = bp_min
    else:
        bp = _pad_to(bsz, tb)  # <= tb-1 rows of zero-padding, keeps max tile

    # ---- zero-pad inputs (padded rows/cols contribute exactly zero) -------
    x_p = x if (bp == bsz and fp == feat) else jnp.pad(
        x, ((0, bp - bsz), (0, fp - feat)))
    w_p = w if fp == feat else jnp.pad(
        w, ((0, fp - feat), (0, fp - feat)))
    b_p = b if fp == feat else jnp.pad(b, ((0, fp - feat),))

    # O(F) prologue in f32 (theta precision kept at the reference level).
    diag_w = jnp.diagonal(w_p).reshape(1, fp).astype(jnp.float32)
    theta = jax.nn.sigmoid(
        jnp.float32(k) * (diag_w + b_p.reshape(1, fp).astype(jnp.float32)))
    w_mx = w_p.astype(matmul_dtype)

    grid = (bp // tb, fp // tf, fp // tf)

    grid_spec = pltpu.PrefetchScalarGridSpec(
        num_scalar_prefetch=0,
        grid=grid,
        in_specs=[
            pl.BlockSpec((tb, tf), lambda i, j, kk: (i, kk)),   # x
            pl.BlockSpec((tf, tf), lambda i, j, kk: (kk, j)),   # w (matmul dtype)
            pl.BlockSpec((1, tf), lambda i, j, kk: (0, kk)),    # theta (f32)
            pl.BlockSpec((1, tf), lambda i, j, kk: (0, j)),     # diag(w) (f32)
        ],
        out_specs=pl.BlockSpec((tb, tf), lambda i, j, kk: (i, j)),
        scratch_shapes=[pltpu.VMEM((tb, tf), jnp.float32)],
    )

    cost = pl.CostEstimate(
        flops=2 * bp * fp * fp,
        transcendentals=0,
        bytes_accessed=(bp * fp * x_bytes * (fp // tf)        # x re-read per j tile
                        + fp * fp * w_bytes * (bp // tb)      # w re-read per batch tile
                        + bp * fp * o_bytes),                 # output write
    )

    out = pl.pallas_call(
        _lateral_inhibition_kernel,
        out_shape=jax.ShapeDtypeStruct((bp, fp), out_dtype),
        grid_spec=grid_spec,
        compiler_params=pltpu.CompilerParams(
            # Batch / N axes parallel (megacore sharding on v7x); K reduction
            # axis arbitrary (output block revisited / accumulated).
            dimension_semantics=("parallel", "parallel", "arbitrary"),
            # v5e's scoped-VMEM default is only 16 MiB; raise it to cover the
            # <=22 MiB double-buffered footprint (still far under v7x's 64 MiB
            # physical VMEM).
            vmem_limit_bytes=32 * 1024 * 1024),
        cost_estimate=cost,
    )(x_p, w_mx, theta, diag_w)

    if bp != bsz or fp != feat:
        out = out[:bsz, :feat]
    return out


def lateral_inhibition_ref(x, w, b, k):
    """Pure-JAX reference mirroring the PyTorch forward."""
    diag_w = jnp.diag(w)
    w_zero_diag = w - jnp.diag(diag_w)
    theta = jax.nn.sigmoid(k * (diag_w + b))
    return (x @ jnp.diag(theta)) @ w_zero_diag


if __name__ == "__main__":
    key = jax.random.PRNGKey(0)
    k_x, k_w, k_b = jax.random.split(key, 3)

    batch = 8
    num_features = 128
    k_scale = 2.0

    # Deterministic "randn"-style parameter init (synthetic, no checkpoint).
    x = jax.random.normal(k_x, (batch, num_features), dtype=jnp.float32)
    w = jax.random.normal(k_w, (num_features, num_features), dtype=jnp.float32)
    b = jax.random.normal(k_b, (num_features,), dtype=jnp.float32)

    ref = lateral_inhibition_ref(x, w, b, k_scale)

    # Exact-path check (f32 MXU operands) — tight tolerance.
    out_f32 = jax.block_until_ready(
        lateral_inhibition(x, w, b, k_scale, matmul_dtype=jnp.float32))
    assert out_f32.shape == (batch, num_features)
    assert jnp.allclose(out_f32, ref, atol=1e-4, rtol=1e-4), "f32 path mismatch"

    # Default fast path (bf16 MXU operands, f32 accumulation) — bf16 tolerance.
    out_bf16 = jax.block_until_ready(lateral_inhibition(x, w, b, k_scale))
    assert out_bf16.shape == (batch, num_features)
    assert jnp.allclose(out_bf16, ref, atol=1e-1, rtol=5e-2), "bf16 path mismatch"

    print("KERNEL_OK")
</pallas_src>

<mosaic_0001>
module attributes {stable_mosaic.version = 11 : i64} {
  func.func @_lateral_inhibition_kernel(%arg0: i32, %arg1: i32, %arg2: i32, %arg3: memref<8x128xf32, #tpu.memory_space<vmem>>, %arg4: memref<128x128xf32, #tpu.memory_space<vmem>>, %arg5: memref<1x128xf32, #tpu.memory_space<vmem>>, %arg6: memref<1x128xf32, #tpu.memory_space<vmem>>, %arg7: memref<8x128xf32, #tpu.memory_space<vmem>>, %arg8: memref<8x128xf32, #tpu.memory_space<vmem>>) attributes {dimension_semantics = [#tpu.dimension_semantics<parallel>, #tpu.dimension_semantics<parallel>, #tpu.dimension_semantics<arbitrary>], iteration_bounds = array<i64: 1, 1, 1>, scalar_prefetch = 0 : i64, scratch_operands = 1 : i64, tpu.core_type = #tpu.core_type<tc>, window_params = [{transform_indices = @transform_0, window_bounds = array<i64: 8, 128>}, {transform_indices = @transform_1, window_bounds = array<i64: 128, 128>}, {transform_indices = @transform_2, window_bounds = array<i64: 1, 128>}, {transform_indices = @transform_3, window_bounds = array<i64: 1, 128>}, {transform_indices = @transform_4, window_bounds = array<i64: 8, 128>}]} {
    %c0_i32 = arith.constant 0 : i32
    %0 = arith.cmpi eq, %arg2, %c0_i32 : i32
    %1 = arith.extui %0 : i1 to i32
    %c0_i32_0 = arith.constant 0 : i32
    %2 = arith.cmpi ne, %1, %c0_i32_0 : i32
    scf.if %2 {
      %cst_13 = arith.constant 0.000000e+00 : f32
      %18 = vector.broadcast %cst_13 : f32 to vector<8x128xf32>
      %c0_14 = arith.constant 0 : index
      %c0_15 = arith.constant 0 : index
      %19 = vector.load %arg8[%c0_14, %c0_15] : memref<8x128xf32, #tpu.memory_space<vmem>>, vector<8x128xf32>
      tpu.vector_store %arg8[%c0_14, %c0_15], %18 {strides = array<i32>} : memref<8x128xf32, #tpu.memory_space<vmem>>, vector<8x128xf32>,
    } else {
    }
    %c0 = arith.constant 0 : index
    %c0_1 = arith.constant 0 : index
    %3 = vector.load %arg3[%c0, %c0_1] : memref<8x128xf32, #tpu.memory_space<vmem>>, vector<8x128xf32>
    %c0_2 = arith.constant 0 : index
    %c0_3 = arith.constant 0 : index
    %4 = vector.load %arg5[%c0_2, %c0_3] : memref<1x128xf32, #tpu.memory_space<vmem>>, vector<1x128xf32>
    %5 = vector.broadcast %4 : vector<1x128xf32> to vector<8x128xf32>
    %6 = arith.mulf %3, %5 : vector<8x128xf32>
    %c0_4 = arith.constant 0 : index
    %c0_5 = arith.constant 0 : index
    %7 = vector.load %arg8[%c0_4, %c0_5] : memref<8x128xf32, #tpu.memory_space<vmem>>, vector<8x128xf32>
    %c0_6 = arith.constant 0 : index
    %c0_7 = arith.constant 0 : index
    %8 = vector.load %arg4[%c0_6, %c0_7] : memref<128x128xf32, #tpu.memory_space<vmem>>, vector<128x128xf32>
    %cst = arith.constant dense<0.000000e+00> : vector<8x128xf32>
    %9 = tpu.matmul %6, %8, %cst {dimension_numbers = #tpu.dot_dimension_numbers<[1], [0], [0], [1], [0, 0, 1, 1], [], []>} : vector<8x128xf32>, vector<128x128xf32>, vector<8x128xf32> -> vector<8x128xf32>
    %10 = arith.addf %7, %9 : vector<8x128xf32>
    %c0_8 = arith.constant 0 : index
    %c0_9 = arith.constant 0 : index
    %11 = vector.load %arg8[%c0_8, %c0_9] : memref<8x128xf32, #tpu.memory_space<vmem>>, vector<8x128xf32>
    tpu.vector_store %arg8[%c0_8, %c0_9], %10 {strides = array<i32>} : memref<8x128xf32, #tpu.memory_space<vmem>>, vector<8x128xf32>,
    %12 = arith.cmpi eq, %arg2, %arg1 : i32
    %13 = arith.extui %12 : i1 to i32
    %c0_i32_10 = arith.constant 0 : i32
    %14 = arith.cmpi ne, %13, %c0_i32_10 : i32
    scf.if %14 {
      %c0_13 = arith.constant 0 : index
      %c0_14 = arith.constant 0 : index
      %18 = vector.load %arg8[%c0_13, %c0_14] : memref<8x128xf32, #tpu.memory_space<vmem>>, vector<8x128xf32>
      %c0_15 = arith.constant 0 : index
      %c0_16 = arith.constant 0 : index
      %19 = vector.load %arg6[%c0_15, %c0_16] : memref<1x128xf32, #tpu.memory_space<vmem>>, vector<1x128xf32>
      %20 = vector.broadcast %19 : vector<1x128xf32> to vector<8x128xf32>
      %21 = arith.mulf %6, %20 : vector<8x128xf32>
      %22 = arith.subf %18, %21 : vector<8x128xf32>
      %c0_17 = arith.constant 0 : index
      %c0_18 = arith.constant 0 : index
      %23 = vector.load %arg8[%c0_17, %c0_18] : memref<8x128xf32, #tpu.memory_space<vmem>>, vector<8x128xf32>
      tpu.vector_store %arg8[%c0_17, %c0_18], %22 {strides = array<i32>} : memref<8x128xf32, #tpu.memory_space<vmem>>, vector<8x128xf32>,
    } else {
    }
    %c0_i32_11 = arith.constant 0 : i32
    %15 = arith.cmpi eq, %arg2, %c0_i32_11 : i32
    %16 = arith.extui %15 : i1 to i32
    %c0_i32_12 = arith.constant 0 : i32
    %17 = arith.cmpi ne, %16, %c0_i32_12 : i32
    scf.if %17 {
      %c0_13 = arith.constant 0 : index
      %c0_14 = arith.constant 0 : index
      %18 = vector.load %arg8[%c0_13, %c0_14] : memref<8x128xf32, #tpu.memory_space<vmem>>, vector<8x128xf32>
      %c0_15 = arith.constant 0 : index
      %c0_16 = arith.constant 0 : index
      %19 = vector.load %arg7[%c0_15, %c0_16] : memref<8x128xf32, #tpu.memory_space<vmem>>, vector<8x128xf32>
      tpu.vector_store %arg7[%c0_15, %c0_16], %18 {strides = array<i32>} : memref<8x128xf32, #tpu.memory_space<vmem>>, vector<8x128xf32>,
    } else {
    }
    return
  }
  func.func @transform_0(%arg0: i32, %arg1: i32, %arg2: i32) -> (i32, i32) {
    %c0_i32 = arith.constant 0 : i32
    return %arg0, %arg2 : i32, i32
  }
  func.func @transform_1(%arg0: i32, %arg1: i32, %arg2: i32) -> (i32, i32) {
    %c0_i32 = arith.constant 0 : i32
    return %arg2, %arg1 : i32, i32
  }
  func.func @transform_2(%arg0: i32, %arg1: i32, %arg2: i32) -> (i32, i32) {
    %c0_i32 = arith.constant 0 : i32
    %c0_i32_0 = arith.constant 0 : i32
    return %c0_i32, %arg2 : i32, i32
  }
  func.func @transform_3(%arg0: i32, %arg1: i32, %arg2: i32) -> (i32, i32) {
    %c0_i32 = arith.constant 0 : i32
    %c0_i32_0 = arith.constant 0 : i32
    return %c0_i32, %arg1 : i32, i32
  }
  func.func @transform_4(%arg0: i32, %arg1: i32, %arg2: i32) -> (i32, i32) {
    %c0_i32 = arith.constant 0 : i32
    return %arg0, %arg1 : i32, i32
  }
}

</mosaic_0001>

<llo_original>
// kernel: tpu_custom_call.1
$region0: #{tpu_custom_call.1}
  #allocation0 [shape = 'u32[]', space=smem, size = 0x4, offset = 0x4, fixed_abs, tag = 'smem constant byte address 0x4 - core index']
  #allocation1 [shape = 'u32[72,128]{1,0:T(1,128)}', space=vmem, size = 0x9000, scoped, tag = 'internal scratch']
  #allocation2 [shape = 'f32[8,128]{1,0:T(8,128)}', space=vmem, size = 0x1000, scoped, tag = 'scratch operand']
  %s0 = inlined_call_operand.hbm [shape: f32[8,128], index: 0, kind: input, shape index: {}]
  %s1 = inlined_call_operand.hbm [shape: f32[128,128], index: 1, kind: input, shape index: {}]
  %s2 = inlined_call_operand.vmem [shape: f32[1,128], index: 2, kind: input, shape index: {}]
  %s3 = inlined_call_operand.vmem [shape: f32[1,128], index: 3, kind: input, shape index: {}]
  %s4 = inlined_call_operand.hbm [shape: f32[8,128], index: 4, kind: output, shape index: {}]
  %s5 = sld [smem:[#allocation0]]
  $region46: #{tpu_custom_call.1} parent=0
    _
  %s7 = ssub.s32 1, %s5
  %s8 = scalar_select 0, %s7, %s5
  $region1: #{tpu_custom_call.1} parent=0
    #allocation3 [shape = 'u8[4096]{0}', space=vmem, size = 0x1000, scoped, tag = 'input window, operand 0, single buffered']
    #allocation4 [shape = 's32[1]{0}', space=sflag, size = 0x4, scoped, tag = 'scoped memory for tpu_custom_call.1']
    #allocation5 [shape = 's32[1]{0}', space=sflag, size = 0x4, scoped, tag = 'scoped memory for tpu_custom_call.1']
    #allocation6 [shape = 'u8[65536]{0}', space=vmem, size = 0x10000, scoped, tag = 'input window, operand 1, single buffered']
    #allocation7 [shape = 's32[1]{0}', space=sflag, size = 0x4, scoped, tag = 'scoped memory for tpu_custom_call.1']
    #allocation8 [shape = 'u8[4096]{0}', space=vmem, size = 0x1000, scoped, tag = 'output window, operand 0, single buffered']
    %9 = vsyncpa [#allocation4], 0
    %10 = vsyncpa [#allocation7], 0
    %11 = vsyncpa [#allocation5], 0
    // Predicated region
    $region2: #{tpu_custom_call.1} parent=1 // pred_check
      _
    $region3: #{tpu_custom_call.1} parent=1 // pred_check_branch
      %13 = sbr.rel (0) target = $region5
    $region4: #{tpu_custom_call.1} parent=1 // pred_region
      %15 = vsyncadd [#allocation4], 0
      %s17 = sshll.u32 %s0, 4
      %s18 = int_to_ptr.hbm [resolvable:$true] %s17
      %s19 = sshll.u32 [#allocation3], 4
      %s20 = int_to_ptr.vmem [resolvable:$true] %s19
      %22 = dma.hbm_to_vmem [thread:$0]  %s18, 128, %s20, [#allocation4]
    $region5: #{tpu_custom_call.1} parent=1 // pred_fallthru
      _
    // Predicated region
    $region6: #{tpu_custom_call.1} parent=1 // pred_check
      _
    $region7: #{tpu_custom_call.1} parent=1 // pred_check_branch
      %24 = sbr.rel (0) target = $region9
    $region8: #{tpu_custom_call.1} parent=1 // pred_region
      %26 = vsyncadd [#allocation7], 0
      %s27 = sshll.u32 %s1, 4
      %s28 = int_to_ptr.hbm [resolvable:$true] %s27
      %s29 = sshll.u32 [#allocation6], 4
      %s30 = int_to_ptr.vmem [resolvable:$true] %s29
      %35 = dma.hbm_to_vmem [thread:$0]  %s28, 2048, %s30, [#allocation7], 128, 128, 8
    $region9: #{tpu_custom_call.1} parent=1 // pred_fallthru
      _
    // Predicated region
    $region10: #{tpu_custom_call.1} parent=1 // pred_check
      _
    $region11: #{tpu_custom_call.1} parent=1 // pred_check_branch
      %37 = sbr.rel (0) target = $region13
    $region12: #{tpu_custom_call.1} parent=1 // pred_region
      _
    $region13: #{tpu_custom_call.1} parent=1 // pred_fallthru
      _
    // Predicated region
    $region14: #{tpu_custom_call.1} parent=1 // pred_check
      _
    $region15: #{tpu_custom_call.1} parent=1 // pred_check_branch
      %39 = sbr.rel (0) target = $region17
    $region16: #{tpu_custom_call.1} parent=1 // pred_region
      _
    $region17: #{tpu_custom_call.1} parent=1 // pred_fallthru
      _
    // Predicated region
    $region18: #{tpu_custom_call.1} parent=1 // pred_check
      _
    $region19: #{tpu_custom_call.1} parent=1 // pred_check_branch
      %41 = sbr.rel (0) target = $region21
    $region20: #{tpu_custom_call.1} parent=1 // pred_region
      %43 = dma.done [#allocation4], 128
    $region21: #{tpu_custom_call.1} parent=1 // pred_fallthru
      _
    // Predicated region
    $region22: #{tpu_custom_call.1} parent=1 // pred_check
      _
    $region23: #{tpu_custom_call.1} parent=1 // pred_check_branch
      %45 = sbr.rel (0) target = $region25
    $region24: #{tpu_custom_call.1} parent=1 // pred_region
      %47 = dma.done [#allocation7], 2048
    $region25: #{tpu_custom_call.1} parent=1 // pred_fallthru
      _
    %p48 = scmp.eq.s32.totalorder 0, 0
    // Predicated region
    $region26: #{tpu_custom_call.1} parent=1 // pred_check
      %p49 = pneg %p48
    $region27: #{tpu_custom_call.1} parent=1 // pred_check_branch
      %51 = sbr.rel (%p49) target = $region29
    $region28: #{tpu_custom_call.1} parent=1 // pred_region
      %52 = vst [vmem:[#allocation2] sm:$0xff] 0.0
    $region29: #{tpu_custom_call.1} parent=1 // pred_fallthru
      _
    %v53 = vld [vmem:[#allocation3] sm:$0xff]
    %v54 = vld [vmem:[%s2] sm:$0x1]
    %v56 = vperm.slane %v54, 0
    %v58 = vmul.f32 %v53, %v56
    %v59 = vld [vmem:[#allocation2] sm:$0xff]
    %v60 = vld [vmem:[#allocation6] sm:$0xff]
    %v61 = vld [vmem:[#allocation6 + $0x8] sm:$0xff]
    %v62 = vld [vmem:[#allocation6 + $0x10] sm:$0xff]
    %v63 = vld [vmem:[#allocation6 + $0x18] sm:$0xff]
    %v64 = vld [vmem:[#allocation6 + $0x20] sm:$0xff]
    %v65 = vld [vmem:[#allocation6 + $0x28] sm:$0xff]
    %v66 = vld [vmem:[#allocation6 + $0x30] sm:$0xff]
    %v67 = vld [vmem:[#allocation6 + $0x38] sm:$0xff]
    %v68 = vld [vmem:[#allocation6 + $0x40] sm:$0xff]
    %v69 = vld [vmem:[#allocation6 + $0x48] sm:$0xff]
    %v70 = vld [vmem:[#allocation6 + $0x50] sm:$0xff]
    %v71 = vld [vmem:[#allocation6 + $0x58] sm:$0xff]
    %v72 = vld [vmem:[#allocation6 + $0x60] sm:$0xff]
    %v73 = vld [vmem:[#allocation6 + $0x68] sm:$0xff]
    %v74 = vld [vmem:[#allocation6 + $0x70] sm:$0xff]
    %v75 = vld [vmem:[#allocation6 + $0x78] sm:$0xff]
    %76 = vmatpush.msra.mxu0 %v75
    %77 = vmatpush.msra.mxu0 %v74
    %78 = vmatpush.msra.mxu0 %v73
    %79 = vmatpush.msra.mxu0 %v72
    %80 = vmatpush.msra.mxu0 %v71
    %81 = vmatpush.msra.mxu0 %v70
    %82 = vmatpush.msra.mxu0 %v69
    %83 = vmatpush.msra.mxu0 %v68
    %84 = vmatpush.msra.mxu0 %v67
    %85 = vmatpush.msra.mxu0 %v66
    %86 = vmatpush.msra.mxu0 %v65
    %87 = vmatpush.msra.mxu0 %v64
    %88 = vmatpush.msra.mxu0 %v63
    %89 = vmatpush.msra.mxu0 %v62
    %90 = vmatpush.msra.mxu0 %v61
    %91 = vmatpush.msra.mxu0 %v60
    %92 = vmatmul.f32.gmra.mxu0 %v58
    %v93 = vpop.f32.mrf.mxu0
    %v94 = vadd.f32 0.0, %v93
    %95 = vdwg.mxu0
    %v96 = vadd.f32 %v59, %v94
    %97 = vst [vmem:[#allocation2] sm:$0xff] %v96
    %p98 = scmp.eq.s32.totalorder 0, 0
    // Predicated region
    $region30: #{tpu_custom_call.1} parent=1 // pred_check
      %p99 = pneg %p98
    $region31: #{tpu_custom_call.1} parent=1 // pred_check_branch
      %101 = sbr.rel (%p99) target = $region33
    $region32: #{tpu_custom_call.1} parent=1 // pred_region
      %v102 = vld [vmem:[#allocation2] sm:$0xff]
      %v103 = vld [vmem:[%s3] sm:$0x1]
      %v105 = vperm.slane %v103, 0
      %v107 = vmul.f32 %v58, %v105
      %v108 = vsub.f32 %v102, %v107
      %109 = vst [vmem:[#allocation2] sm:$0xff] %v108
    $region33: #{tpu_custom_call.1} parent=1 // pred_fallthru
      _
    // Predicated region
    $region34: #{tpu_custom_call.1} parent=1 // pred_check
      %p110 = pneg %p48
    $region35: #{tpu_custom_call.1} parent=1 // pred_check_branch
      %112 = sbr.rel (%p110) target = $region37
    $region36: #{tpu_custom_call.1} parent=1 // pred_region
      %v113 = vld [vmem:[#allocation2] sm:$0xff]
      %114 = vst [vmem:[#allocation8] sm:$0xff] %v113
    $region37: #{tpu_custom_call.1} parent=1 // pred_fallthru
      _
    // Predicated region
    $region38: #{tpu_custom_call.1} parent=1 // pred_check
      _
    $region39: #{tpu_custom_call.1} parent=1 // pred_check_branch
      %116 = sbr.rel (0) target = $region41
    $region40: #{tpu_custom_call.1} parent=1 // pred_region
      %118 = vsyncadd [#allocation5], 0
      %s120 = sshll.u32 [#allocation8], 4
      %s121 = int_to_ptr.vmem [resolvable:$true] %s120
      %s122 = sshll.u32 %s4, 4
      %s123 = int_to_ptr.hbm [resolvable:$true] %s122
      %125 = dma.vmem_to_hbm [thread:$0]  %s121, 128, %s123, [#allocation5]
    $region41: #{tpu_custom_call.1} parent=1 // pred_fallthru
      _
    // Predicated region
    $region42: #{tpu_custom_call.1} parent=1 // pred_check
      _
    $region43: #{tpu_custom_call.1} parent=1 // pred_check_branch
      %127 = sbr.rel (0) target = $region45
    $region44: #{tpu_custom_call.1} parent=1 // pred_region
      %129 = dma.done [#allocation5], 128
    $region45: #{tpu_custom_call.1} parent=1 // pred_fallthru
      _
    %130 = vsyncpa [#allocation4], 1
    %131 = vsyncpa [#allocation7], 1
    %132 = vsyncpa [#allocation5], 1

</llo_original>
